<compile_context>
chip_gen: v5e
topology: v5e:2x2
jax: 0.10.0
libtpu: 0.0.40
codegen_flags: <defaults>
</compile_context>

<pallas_src>
import jax
import jax.numpy as jnp
from jax.experimental import pallas as pl
from jax.experimental.pallas import tpu as pltpu


def attention_kernel(x_ref, w_ref, rep_ref, attn_ref):
    # x_ref:    (TB, L, H) input tile
    # w_ref:    (1, H)     attention weight row
    # rep_ref:  (TB, H)    weighted representation
    # attn_ref: (TB, L)    attention distribution
    x = x_ref[...]                                   # (TB, L, H), input dtype
    w = w_ref[...].astype(x.dtype)                   # (1, H) -> broadcasts over (TB, L, H)

    # scores = relu(<x, w>) over H : VPU multiply + lane reduce, f32 accumulate.
    scores = jnp.sum(x * w, axis=-1, dtype=jnp.float32)      # (TB, L)
    scores = jnp.maximum(scores, 0.0)

    # numerically-stable softmax over the sequence axis (exact division for accuracy)
    m = jnp.max(scores, axis=-1, keepdims=True)
    e = jnp.exp(scores - m)
    p = e / jnp.sum(e, axis=-1, keepdims=True)                # (TB, L) f32
    # NOTE: the PyTorch mask-of-ones renorm (p / sum(p)) is an exact identity
    # immediately after softmax, so it is fused away here.

    # weighted sum over L : broadcast multiply + sublane reduce (f32 via promotion).
    rep = jnp.sum(p[:, :, None] * x.astype(jnp.float32), axis=1)   # (TB, H) f32

    rep_ref[...] = rep.astype(rep_ref.dtype)
    attn_ref[...] = p.astype(attn_ref.dtype)


def _choose_tb(B, L, H, itemsize, budget_bytes=8 * 1024 * 1024):
    """Rows per block: biggest VMEM-budgeted, 8-aligned block (or the whole batch)."""
    row_bytes = max(1, L * H * itemsize)
    rows = max(1, budget_bytes // row_bytes)
    if rows >= B or B <= 8:
        # Whole batch fits (or batch too small to split into 8-aligned blocks):
        # block dim equals the full array dim, which always satisfies layout rules.
        return B
    tb = max(8, (rows // 8) * 8)   # 8-aligned sublane blocks
    # TODO(synk): if a single row exceeds the VMEM budget (huge L*H), an inner
    # L-tiling with online-softmax accumulators would be needed; not required here.
    return min(tb, B)


def attention_forward(inputs, lengths, att_weights):
    """inputs: (B, L, H); att_weights: (1, H); lengths unused (matches reference)."""
    del lengths  # TODO(synk): `lengths` is never used in the PyTorch forward (no masking)
    B, L, H = inputs.shape
    tb = _choose_tb(B, L, H, inputs.dtype.itemsize)
    grid = (pl.cdiv(B, tb),)

    rep, attn = pl.pallas_call(
        attention_kernel,
        out_shape=(
            jax.ShapeDtypeStruct((B, H), inputs.dtype),
            jax.ShapeDtypeStruct((B, L), inputs.dtype),
        ),
        grid_spec=pltpu.PrefetchScalarGridSpec(
            num_scalar_prefetch=0,
            grid=grid,
            in_specs=[
                pl.BlockSpec((tb, L, H), lambda b: (b, 0, 0)),
                pl.BlockSpec((1, H), lambda b: (0, 0)),
            ],
            out_specs=[
                pl.BlockSpec((tb, H), lambda b: (b, 0)),
                pl.BlockSpec((tb, L), lambda b: (b, 0)),
            ],
        ),
        compiler_params=pltpu.CompilerParams(
            dimension_semantics=("parallel",),
            vmem_limit_bytes=48 * 1024 * 1024,
        ),
    )(inputs, att_weights)
    return rep, attn


def _reference(inputs, att_weights):
    # pure-JAX reference mirroring the PyTorch forward (including identity renorm)
    scores = jnp.einsum("blh,h->bl", inputs, att_weights[0])
    scores = jnp.maximum(scores, 0.0)
    attn = jax.nn.softmax(scores, axis=-1)
    attn = attn / jnp.sum(attn, axis=-1, keepdims=True)
    rep = jnp.einsum("blh,bl->bh", inputs, attn)
    return rep, attn


if __name__ == "__main__":
    B, L, H = 2, 8, 32  # batch, seq, hidden
    key = jax.random.PRNGKey(0)
    k_in, k_w = jax.random.split(key)

    inputs = jax.random.normal(k_in, (B, L, H), dtype=jnp.float32)
    lengths = jnp.full((B,), L, dtype=jnp.int32)

    # deterministic init matching nn.init.uniform_(-stdv, stdv), stdv = 1/sqrt(H)
    stdv = 1.0 / jnp.sqrt(jnp.float32(H))
    att_weights = jax.random.uniform(
        k_w, (1, H), dtype=jnp.float32, minval=-stdv, maxval=stdv
    )

    rep, attn = attention_forward(inputs, lengths, att_weights)
    jax.block_until_ready((rep, attn))

    rep_ref, attn_ref = _reference(inputs, att_weights)
    assert rep.shape == (B, H) and attn.shape == (B, L)
    assert jnp.allclose(rep, rep_ref, atol=1e-5, rtol=1e-5)
    assert jnp.allclose(attn, attn_ref, atol=1e-5, rtol=1e-5)

    print("KERNEL_OK")
</pallas_src>

<mosaic_0001>
module attributes {stable_mosaic.version = 11 : i64} {
  func.func @attention_kernel(%arg0: i32, %arg1: memref<2x8x32xf32, #tpu.memory_space<vmem>>, %arg2: memref<1x32xf32, #tpu.memory_space<vmem>>, %arg3: memref<2x32xf32, #tpu.memory_space<vmem>>, %arg4: memref<2x8xf32, #tpu.memory_space<vmem>>) attributes {dimension_semantics = [#tpu.dimension_semantics<parallel>], iteration_bounds = array<i64: 1>, scalar_prefetch = 0 : i64, scratch_operands = 0 : i64, tpu.core_type = #tpu.core_type<tc>, window_params = [{transform_indices = @transform_0, window_bounds = array<i64: 2, 8, 32>}, {pipeline_mode = #tpu.pipeline_mode<synchronous>, transform_indices = @transform_1, window_bounds = array<i64: 1, 32>}, {transform_indices = @transform_2, window_bounds = array<i64: 2, 32>}, {transform_indices = @transform_3, window_bounds = array<i64: 2, 8>}]} {
    %c0 = arith.constant 0 : index
    %c0_0 = arith.constant 0 : index
    %c0_1 = arith.constant 0 : index
    %0 = vector.load %arg1[%c0, %c0_0, %c0_1] : memref<2x8x32xf32, #tpu.memory_space<vmem>>, vector<2x8x32xf32>
    %c0_2 = arith.constant 0 : index
    %c0_3 = arith.constant 0 : index
    %1 = vector.load %arg2[%c0_2, %c0_3] : memref<1x32xf32, #tpu.memory_space<vmem>>, vector<1x32xf32>
    %2 = vector.shape_cast %1 : vector<1x32xf32> to vector<1x1x32xf32>
    %3 = vector.broadcast %2 : vector<1x1x32xf32> to vector<2x8x32xf32>
    %4 = arith.mulf %0, %3 : vector<2x8x32xf32>
    %cst = arith.constant dense<0.000000e+00> : vector<2x8xf32>
    %5 = vector.multi_reduction <add>, %4, %cst [2] : vector<2x8x32xf32> to vector<2x8xf32>
    %cst_4 = arith.constant 0.000000e+00 : f32
    %6 = vector.broadcast %cst_4 : f32 to vector<2x8xf32>
    %7 = arith.maximumf %5, %6 : vector<2x8xf32>
    %cst_5 = arith.constant dense<0xFF800000> : vector<2xf32>
    %8 = vector.multi_reduction <maximumf>, %7, %cst_5 [1] : vector<2x8xf32> to vector<2xf32>
    %9 = vector.shape_cast %8 : vector<2xf32> to vector<2x1xf32>
    %10 = vector.broadcast %9 : vector<2x1xf32> to vector<2x8xf32>
    %11 = arith.subf %7, %10 : vector<2x8xf32>
    %12 = math.exp %11 : vector<2x8xf32>
    %cst_6 = arith.constant dense<0.000000e+00> : vector<2xf32>
    %13 = vector.multi_reduction <add>, %12, %cst_6 [1] : vector<2x8xf32> to vector<2xf32>
    %14 = vector.shape_cast %13 : vector<2xf32> to vector<2x1xf32>
    %15 = vector.broadcast %14 : vector<2x1xf32> to vector<2x8xf32>
    %16 = arith.divf %12, %15 : vector<2x8xf32>
    %17 = vector.shape_cast %16 : vector<2x8xf32> to vector<2x8x1xf32>
    %18 = vector.broadcast %17 : vector<2x8x1xf32> to vector<2x8x32xf32>
    %19 = arith.mulf %18, %0 : vector<2x8x32xf32>
    %cst_7 = arith.constant dense<0.000000e+00> : vector<2x32xf32>
    %20 = vector.multi_reduction <add>, %19, %cst_7 [1] : vector<2x8x32xf32> to vector<2x32xf32>
    %c0_8 = arith.constant 0 : index
    %c0_9 = arith.constant 0 : index
    %21 = vector.load %arg3[%c0_8, %c0_9] : memref<2x32xf32, #tpu.memory_space<vmem>>, vector<2x32xf32>
    tpu.vector_store %arg3[%c0_8, %c0_9], %20 {strides = array<i32>} : memref<2x32xf32, #tpu.memory_space<vmem>>, vector<2x32xf32>,
    %c0_10 = arith.constant 0 : index
    %c0_11 = arith.constant 0 : index
    %22 = vector.load %arg4[%c0_10, %c0_11] : memref<2x8xf32, #tpu.memory_space<vmem>>, vector<2x8xf32>
    tpu.vector_store %arg4[%c0_10, %c0_11], %16 {strides = array<i32>} : memref<2x8xf32, #tpu.memory_space<vmem>>, vector<2x8xf32>,
    return
  }
  func.func @transform_0(%arg0: i32) -> (i32, i32, i32) {
    %c0_i32 = arith.constant 0 : i32
    %c0_i32_0 = arith.constant 0 : i32
    %c0_i32_1 = arith.constant 0 : i32
    return %arg0, %c0_i32, %c0_i32_0 : i32, i32, i32
  }
  func.func @transform_1(%arg0: i32) -> (i32, i32) {
    %c0_i32 = arith.constant 0 : i32
    %c0_i32_0 = arith.constant 0 : i32
    %c0_i32_1 = arith.constant 0 : i32
    return %c0_i32, %c0_i32_0 : i32, i32
  }
  func.func @transform_2(%arg0: i32) -> (i32, i32) {
    %c0_i32 = arith.constant 0 : i32
    %c0_i32_0 = arith.constant 0 : i32
    return %arg0, %c0_i32 : i32, i32
  }
  func.func @transform_3(%arg0: i32) -> (i32, i32) {
    %c0_i32 = arith.constant 0 : i32
    %c0_i32_0 = arith.constant 0 : i32
    return %arg0, %c0_i32 : i32, i32
  }
}

</mosaic_0001>

<llo_original>
// kernel: tpu_custom_call.1
$region0: #{tpu_custom_call.1}
  #allocation0 [shape = 'u32[]', space=smem, size = 0x4, offset = 0x4, fixed_abs, tag = 'smem constant byte address 0x4 - core index']
  #allocation1 [shape = 'u32[72,128]{1,0:T(1,128)}', space=vmem, size = 0x9000, scoped, tag = 'internal scratch']
  %s0 = inlined_call_operand.hbm [shape: f32[2,8,32], index: 0, kind: input, shape index: {}]
  %s1 = inlined_call_operand.hbm [shape: f32[1,32], index: 1, kind: input, shape index: {}]
  %s2 = inlined_call_operand.hbm [shape: f32[2,32], index: 2, kind: output, shape index: {0}]
  %s3 = inlined_call_operand.hbm [shape: f32[2,8], index: 3, kind: output, shape index: {1}]
  %4 = xla_tuple %s2, %s3
  %s5 = sld [smem:[#allocation0]]
  $region34: #{tpu_custom_call.1} parent=0
    _
  %s7 = ssub.s32 1, %s5
  %s8 = scalar_select 0, %s7, %s5
  $region1: #{tpu_custom_call.1} parent=0
    #allocation2 [shape = 'u8[8192]{0}', space=vmem, size = 0x2000, scoped, tag = 'input window, operand 0, single buffered']
    #allocation3 [shape = 's32[1]{0}', space=sflag, size = 0x4, scoped, tag = 'scoped memory for tpu_custom_call.1']
    #allocation4 [shape = 's32[1]{0}', space=sflag, size = 0x4, scoped, tag = 'scoped memory for tpu_custom_call.1']
    #allocation5 [shape = 'u8[512]{0}', space=vmem, size = 0x400, scoped, tag = 'input window, operand 1, single buffered']
    #allocation6 [shape = 's32[1]{0}', space=sflag, size = 0x4, scoped, tag = 'scoped memory for tpu_custom_call.1']
    #allocation7 [shape = 'u8[1024]{0}', space=vmem, size = 0x400, scoped, tag = 'output window, operand 0, single buffered']
    #allocation8 [shape = 'u8[1024]{0}', space=vmem, size = 0x400, scoped, tag = 'output window, operand 1, single buffered']
    #allocation9 [shape = 's32[1]{0}', space=sflag, size = 0x4, scoped, tag = 'scoped memory for tpu_custom_call.1']
    %9 = vsyncpa [#allocation3], 0
    %10 = vsyncpa [#allocation6], 0
    %11 = vsyncpa [#allocation4], 0
    %12 = vsyncpa [#allocation9], 0
    // Predicated region
    $region2: #{tpu_custom_call.1} parent=1 // pred_check
      _
    $region3: #{tpu_custom_call.1} parent=1 // pred_check_branch
      %14 = sbr.rel (0) target = $region5
    $region4: #{tpu_custom_call.1} parent=1 // pred_region
      %16 = vsyncadd [#allocation3], 0
      %s17 = sshll.u32 %s0, 4
      %s18 = int_to_ptr.hbm [resolvable:$true] %s17
      %s19 = sshll.u32 [#allocation2], 4
      %s20 = int_to_ptr.vmem [resolvable:$true] %s19
      %25 = dma.hbm_to_vmem [thread:$0]  %s18, 256, %s20, [#allocation3], 128, 128, 8
    $region5: #{tpu_custom_call.1} parent=1 // pred_fallthru
      _
    // Predicated region
    $region6: #{tpu_custom_call.1} parent=1 // pred_check
      _
    $region7: #{tpu_custom_call.1} parent=1 // pred_check_branch
      %27 = sbr.rel (0) target = $region9
    $region8: #{tpu_custom_call.1} parent=1 // pred_region
      %29 = vsyncadd [#allocation6], 0
      %s31 = sshll.u32 %s1, 4
      %s32 = int_to_ptr.hbm [resolvable:$true] %s31
      %s33 = sshll.u32 [#allocation5], 4
      %s34 = int_to_ptr.vmem [resolvable:$true] %s33
      %36 = dma.hbm_to_vmem [thread:$0]  %s32, 16, %s34, [#allocation6]
    $region9: #{tpu_custom_call.1} parent=1 // pred_fallthru
      _
    // Predicated region
    $region10: #{tpu_custom_call.1} parent=1 // pred_check
      _
    $region11: #{tpu_custom_call.1} parent=1 // pred_check_branch
      %38 = sbr.rel (0) target = $region13
    $region12: #{tpu_custom_call.1} parent=1 // pred_region
      %40 = dma.done [#allocation3], 256
    $region13: #{tpu_custom_call.1} parent=1 // pred_fallthru
      _
    // Predicated region
    $region14: #{tpu_custom_call.1} parent=1 // pred_check
      _
    $region15: #{tpu_custom_call.1} parent=1 // pred_check_branch
      %42 = sbr.rel (0) target = $region17
    $region16: #{tpu_custom_call.1} parent=1 // pred_region
      %44 = dma.done [#allocation6], 16
    $region17: #{tpu_custom_call.1} parent=1 // pred_fallthru
      _
    %v45 = vld [vmem:[#allocation2] sm:$0xff]
    %v46 = vld [vmem:[#allocation2 + $0x8] sm:$0xff]
    %v47 = vld [vmem:[#allocation5] sm:$0x1]
    %v49 = vperm.slane %v47, 0
    %v51 = vmul.f32 %v45, %v49
    %v52 = vmul.f32 %v46, %v49
    %vm53 = vcmask 261120
    %v54 = vsel %vm53, %v51, 0.0
    %55 = vadd.xlane.f32.xlu0 %v54
    %v56 = vpop.xlane.xlu0 %55
    %v57 = vsel %vm53, %v52, 0.0
    %58 = vadd.xlane.f32.xlu0 %v57
    %v59 = vpop.xlane.xlu0 %58
    %v60 = vmax.f32 %v56, 0.0
    %v61 = vmax.f32 %v59, 0.0
    %v64 = vlaneseq
    %v65 = vand.u32 %v64, 127
    %v66 = vperm.slane %v60, %v65
    %v67 = vperm.slane %v61, %v65
    %vm68 = vcmask 1041409
    %v69 = vsel %vm68, %v67, %v66
    %vm71 = vcmask 58368
    %v72 = vsel %vm71, %v69, -inf
    %73 = vmax.xlane.f32.xlu0 %v72
    %v74 = vpop.xlane.xlu0 %73
    %v76 = vperm.slane %v74, 0
    %v77 = vperm.slane %v74, 1
    %v80 = vsub.f32 %v60, %v76
    %v81 = vsub.f32 %v61, %v77
    %v82 = vmul.f32 %v80, 1.442695
    %v83 = vpow.pop %v82
    %v84 = vmul.f32 %v81, 1.442695
    %v85 = vpow.pop %v84
    %88 = vset.pattern.permute.xlu0 0
    %89 = vperm.xlu0 %88, %v83
    %v90 = vpop.permute.xlu0 %89
    %91 = vset.pattern.permute.xlu0 0
    %92 = vperm.xlu0 %91, %v85
    %v93 = vpop.permute.xlu0 %92
    %v94 = vperm.slane %v90, %v65
    %v95 = vperm.slane %v93, %v65
    %v96 = vsel %vm68, %v95, %v94
    %v98 = vsel %vm71, %v96, 0.0
    %99 = vadd.xlane.f32.xlu0 %v98
    %v100 = vpop.xlane.xlu0 %99
    %v102 = vperm.slane %v100, 0
    %v103 = vperm.slane %v100, 1
    %v106 = vrcp.pop %v102
    %v107 = vmul.f32 %v102, %v106
    %v108 = vsub.f32 1.0, %v107
    %v109 = vmul.f32 %v106, %v108
    %v110 = vadd.f32 %v106, %v109
    %vm111 = vweird.f32 %v102
    %vm112 = vweird.f32 %v106
    %vm113 = vmor %vm111, %vm112
    %v114 = vsel %vm113, %v106, %v110
    %v115 = vand.u32 2147483647, %v102
    %vm116 = vcmp.eq.f32.partialorder %v115, 8.507059e+37
    %v117 = vand.u32 %v102, 2147483648
    %v118 = vor.u32 1.1754944e-38, %v117
    %v119 = vsel %vm116, %v118, %v114
    %v120 = vmul.f32 %v83, %v119
    %v121 = vrcp.pop %v103
    %v122 = vmul.f32 %v103, %v121
    %v123 = vsub.f32 1.0, %v122
    %v124 = vmul.f32 %v121, %v123
    %v125 = vadd.f32 %v121, %v124
    %vm126 = vweird.f32 %v103
    %vm127 = vweird.f32 %v121
    %vm128 = vmor %vm126, %vm127
    %v129 = vsel %vm128, %v121, %v125
    %v130 = vand.u32 2147483647, %v103
    %vm131 = vcmp.eq.f32.partialorder %v130, 8.507059e+37
    %v132 = vand.u32 %v103, 2147483648
    %v133 = vor.u32 1.1754944e-38, %v132
    %v134 = vsel %vm131, %v133, %v129
    %v135 = vmul.f32 %v85, %v134
    %137 = vset.pattern.permute.xlu0 0
    %138 = vperm.xlu0 %137, %v120
    %v139 = vpop.permute.xlu0 %138
    %142 = vset.pattern.permute.xlu0 0
    %143 = vperm.xlu0 %142, %v135
    %v144 = vpop.permute.xlu0 %143
    %v146 = vmul.f32 %v139, %v45
    %v147 = vmul.f32 %v144, %v46
    %v148 = vsel %vm53, %v146, 0.0
    %v149 = vrot.slane %v148, 4
    %v150 = vadd.f32 %v148, %v149
    %v151 = vrot.slane %v150, 2
    %v152 = vadd.f32 %v150, %v151
    %v153 = vrot.slane %v152, 1
    %v154 = vadd.f32 %v152, %v153
    %v155 = vsel %vm53, %v147, 0.0
    %v156 = vrot.slane %v155, 4
    %v157 = vadd.f32 %v155, %v156
    %v158 = vrot.slane %v157, 2
    %v159 = vadd.f32 %v157, %v158
    %v160 = vrot.slane %v159, 1
    %v161 = vadd.f32 %v159, %v160
    %v164 = vsel %vm68, %v161, %v154
    %vm166 = vcmask 254976
    %167 = vst.msk [vmem:[#allocation7] sm:$0x3] %vm166, %v164
    %v168 = vperm.slane %v139, %v65
    %v169 = vperm.slane %v144, %v65
    %v170 = vsel %vm68, %v169, %v168
    %172 = vst.msk [vmem:[#allocation8] sm:$0x3] %vm71, %v170
    // Predicated region
    $region18: #{tpu_custom_call.1} parent=1 // pred_check
      _
    $region19: #{tpu_custom_call.1} parent=1 // pred_check_branch
      %174 = sbr.rel (0) target = $region21
    $region20: #{tpu_custom_call.1} parent=1 // pred_region
      %176 = vsyncadd [#allocation4], 0
      %s178 = sshll.u32 [#allocation7], 4
      %s179 = int_to_ptr.vmem [resolvable:$true] %s178
      %s180 = sshll.u32 %s2, 4
      %s181 = int_to_ptr.hbm [resolvable:$true] %s180
      %183 = dma.vmem_to_hbm [thread:$0]  %s179, 32, %s181, [#allocation4]
    $region21: #{tpu_custom_call.1} parent=1 // pred_fallthru
      _
    // Predicated region
    $region22: #{tpu_custom_call.1} parent=1 // pred_check
      _
    $region23: #{tpu_custom_call.1} parent=1 // pred_check_branch
      %185 = sbr.rel (0) target = $region25
    $region24: #{tpu_custom_call.1} parent=1 // pred_region
      %187 = vsyncadd [#allocation9], 0
      %s189 = sshll.u32 [#allocation8], 4
      %s190 = int_to_ptr.vmem [resolvable:$true] %s189
      %s191 = sshll.u32 %s3, 4
      %s192 = int_to_ptr.hbm [resolvable:$true] %s191
      %194 = dma.vmem_to_hbm [thread:$0]  %s190, 32, %s192, [#allocation9]
    $region25: #{tpu_custom_call.1} parent=1 // pred_fallthru
      _
    // Predicated region
    $region26: #{tpu_custom_call.1} parent=1 // pred_check
      _
    $region27: #{tpu_custom_call.1} parent=1 // pred_check_branch
      %196 = sbr.rel (0) target = $region29
    $region28: #{tpu_custom_call.1} parent=1 // pred_region
      %198 = dma.done [#allocation4], 32
    $region29: #{tpu_custom_call.1} parent=1 // pred_fallthru
      _
    // Predicated region
    $region30: #{tpu_custom_call.1} parent=1 // pred_check
      _
    $region31: #{tpu_custom_call.1} parent=1 // pred_check_branch
      %200 = sbr.rel (0) target = $region33
    $region32: #{tpu_custom_call.1} parent=1 // pred_region
      %202 = dma.done [#allocation9], 32
    $region33: #{tpu_custom_call.1} parent=1 // pred_fallthru
      _
    %203 = vsyncpa [#allocation3], 1
    %204 = vsyncpa [#allocation6], 1
    %205 = vsyncpa [#allocation4], 1
    %206 = vsyncpa [#allocation9], 1

</llo_original>
